<compile_context>
chip_gen: v7x
topology: tpu7x:2x2x1
jax: 0.10.0
libtpu: 0.0.40
codegen_flags: <defaults>
</compile_context>

<pallas_src>
import functools

import jax
import jax.numpy as jnp
from jax.experimental import pallas as pl
from jax.experimental.pallas import tpu as pltpu

# bf16 operands + f32 accumulation (recommended for v6e/v7x); epilogue is f32.
MATMUL_OPERAND_DTYPE = jnp.bfloat16


# ----------------------------------------------------------------------------
# Pallas kernels
# ----------------------------------------------------------------------------
def _matmul_bias_act_kernel(x_ref, w_ref, b_ref, o_ref, *, activation):
    # MXU matmul with f32 accumulation; bias-add / tanh epilogue stays f32
    # (v5e has no bf16 VPU/EUP).
    acc = jnp.dot(x_ref[...], w_ref[...], preferred_element_type=jnp.float32)
    acc = acc + b_ref[...]                       # (1, N) broadcast over rows
    if activation == "tanh":
        acc = jnp.tanh(acc)
    o_ref[...] = acc.astype(o_ref.dtype)


def _pick_block_m(M, K, N, op_bytes, budget_bytes=8 * 1024 * 1024, cap=512):
    """Row-tile size: full extent when small (always a legal block), else a
    <=512-row tile sized so the double-buffered working set stays well under
    the default scoped-VMEM limit, even on v7x (64 MiB part)."""
    if M <= cap:
        return M
    bm = cap                                       # multiple of 16 (bf16-safe)

    def vmem_bytes(b):
        # double-buffered activation + output tiles, resident weights + bias
        return 2 * b * K * op_bytes + 2 * b * N * 4 + K * N * op_bytes + 4 * N

    while bm > 16 and vmem_bytes(bm) > budget_bytes:
        bm //= 2
    return bm


def matmul_bias_act(x, w, b, activation=None):
    """out = act(x @ w + b).  x: (M, K), w: (K, N), b: (N,) -> f32 (M, N).

    Row-tiled over M with a "parallel" grid axis; bf16 operands with f32
    accumulation by default; f32 bias / activation epilogue."""
    M, K = x.shape
    K2, N = w.shape
    assert K == K2
    op_dtype = MATMUL_OPERAND_DTYPE
    op_bytes = jnp.dtype(op_dtype).itemsize
    x = x.astype(op_dtype)
    w = w.astype(op_dtype)
    b = b.astype(jnp.float32).reshape(1, N)

    bm = _pick_block_m(M, K, N, op_bytes)
    grid = (pl.cdiv(M, bm),)
    cost = pl.CostEstimate(
        flops=2 * M * K * N,
        transcendentals=(M * N) if activation == "tanh" else 0,
        bytes_accessed=M * K * op_bytes + K * N * op_bytes + 4 * N + 4 * M * N,
    )
    return pl.pallas_call(
        functools.partial(_matmul_bias_act_kernel, activation=activation),
        out_shape=jax.ShapeDtypeStruct((M, N), jnp.float32),
        grid=grid,
        in_specs=[
            pl.BlockSpec((bm, K), lambda i: (i, 0)),   # row tile of activations
            pl.BlockSpec((K, N), lambda i: (0, 0)),    # weights resident
            pl.BlockSpec((1, N), lambda i: (0, 0)),    # bias resident
        ],
        out_specs=pl.BlockSpec((bm, N), lambda i: (i, 0)),
        compiler_params=pltpu.CompilerParams(dimension_semantics=("parallel",)),
        cost_estimate=cost,
    )(x, w, b)


def _scale_shift_tanh_kernel(x_ref, s_ref, t_ref, o_ref):
    o_ref[...] = jnp.tanh(x_ref[...] * s_ref[...] + t_ref[...])


def _scale_shift_tanh_call(x, s, t):
    R, L = x.shape
    br = R if R <= 1024 else 1024                  # full block or 1024-row tiles
    grid = (pl.cdiv(R, br),)
    cost = pl.CostEstimate(flops=2 * R * L, transcendentals=R * L,
                           bytes_accessed=8 * R * L + 8 * L)
    return pl.pallas_call(
        _scale_shift_tanh_kernel,
        out_shape=jax.ShapeDtypeStruct((R, L), jnp.float32),
        grid=grid,
        in_specs=[
            pl.BlockSpec((br, L), lambda i: (i, 0)),
            pl.BlockSpec((1, L), lambda i: (0, 0)),
            pl.BlockSpec((1, L), lambda i: (0, 0)),
        ],
        out_specs=pl.BlockSpec((br, L), lambda i: (i, 0)),
        compiler_params=pltpu.CompilerParams(dimension_semantics=("parallel",)),
        cost_estimate=cost,
    )(x, s, t)


def scale_shift_tanh(x, scale, shift):
    """tanh(x * scale + shift).  x: (M, C) f32 (row-major), scale/shift: (C,).

    Lane-dense path: view the contiguous (M, C) slab as (M*C/128, 128) and tile
    the per-channel scale/shift along lanes -> full-width stores instead of
    masked 32-lane stores."""
    M, C = x.shape
    total = M * C
    if C <= 128 and 128 % C == 0 and total % 128 == 0:
        rep = 128 // C
        xr = x.reshape(total // 128, 128)          # pure view, no data movement
        s = jnp.tile(scale.astype(jnp.float32), rep).reshape(1, 128)
        t = jnp.tile(shift.astype(jnp.float32), rep).reshape(1, 128)
        return _scale_shift_tanh_call(xr, s, t).reshape(M, C)
    return _scale_shift_tanh_call(
        x, scale.astype(jnp.float32).reshape(1, C),
        shift.astype(jnp.float32).reshape(1, C))


# ----------------------------------------------------------------------------
# Glue: NHWC im2col, conv wrapper, batch-norm, linear-head folding, init
# ----------------------------------------------------------------------------
def im2col_nhwc(x, kh, kw, sh, sw):
    """x: (N, H, W, C) -> (N*Ho*Wo, kh*kw*C); column order (kh, kw, c)."""
    N, H, W, C = x.shape
    Ho = (H - kh) // sh + 1
    Wo = (W - kw) // sw + 1
    cols = []
    for i in range(kh):
        for j in range(kw):
            cols.append(x[:, i:i + sh * Ho:sh, j:j + sw * Wo:sw, :])  # (N,Ho,Wo,C)
    col = jnp.stack(cols, axis=3)                  # (N, Ho, Wo, kh*kw, C)
    col = col.reshape(N * Ho * Wo, kh * kw * C)
    # NOTE: the kh*kw-duplicated column matrix is still materialized by XLA;
    # fusing the 16 shifted dots inside the kernel would cut conv HBM reads
    # further, but the folding / layout / tiling changes dominate at these sizes.
    return col, Ho, Wo


def conv2d_pallas_nhwc(x, w, b, stride, activation=None):
    """x: (N, H, W, I) NHWC; w: (O, I, KH, KW) (PyTorch layout); b: (O,).
    Returns NHWC output (N, Ho, Wo, O) — no NCHW round-trips."""
    O, I, KH, KW = w.shape
    N = x.shape[0]
    col, Ho, Wo = im2col_nhwc(x, KH, KW, stride[0], stride[1])
    w2 = jnp.transpose(w, (2, 3, 1, 0)).reshape(KH * KW * I, O)  # (kh,kw,c) rows
    out = matmul_bias_act(col, w2, b, activation)   # (N*Ho*Wo, O)
    return out.reshape(N, Ho, Wo, O)


def batchnorm_tanh_pallas_nhwc(x, gamma, beta, eps=1e-5):
    """Training-mode BatchNorm2d (batch statistics, biased variance) + tanh.
    x: NHWC. Stats reduced in JAX (tiny); normalize+tanh in a lane-dense
    Pallas kernel. No layout transposes (channels already last)."""
    N, H, W, C = x.shape
    x2 = x.reshape(N * H * W, C)                    # free, contiguous view
    mean = jnp.mean(x2, axis=0)
    var = jnp.mean(jnp.square(x2 - mean), axis=0)   # biased (training-mode)
    inv_std = jax.lax.rsqrt(var + eps)
    scale = gamma * inv_std
    shift = beta - mean * scale
    y = scale_shift_tanh(x2, scale, shift)
    return y.reshape(N, H, W, C)


def fold_linear_head(params, Ho, Wo, C):
    """Fold Flatten permutation + lin1 + lin2 + cls + head into one (W, b).
    Exactly equivalent in real arithmetic: there is no nonlinearity between
    these four Linears."""
    d1 = params["lin1_w"].shape[1]
    # lin1_w rows are ordered (c, h, w) per PyTorch Flatten of NCHW; permute to
    # the NHWC flatten order (h, w, c) used by the backbone here.
    w1 = params["lin1_w"].reshape(C, Ho, Wo, d1).transpose(1, 2, 0, 3)
    w1 = w1.reshape(C * Ho * Wo, d1)
    w = w1 @ params["lin2_w"] @ params["cls_w"] @ params["head_w"]
    b = params["lin1_b"] @ params["lin2_w"] + params["lin2_b"]
    b = b @ params["cls_w"] + params["cls_b"]
    b = b @ params["head_w"] + params["head_b"]
    return w, b


def init_conv(key, O, I, KH, KW):
    kw_, kb_ = jax.random.split(key)
    bound = 1.0 / jnp.sqrt(I * KH * KW)
    w = jax.random.uniform(kw_, (O, I, KH, KW), jnp.float32, -bound, bound)
    b = jax.random.uniform(kb_, (O,), jnp.float32, -bound, bound)
    return w, b


def init_linear(key, fan_in, fan_out):
    kw_, kb_ = jax.random.split(key)
    bound = 1.0 / jnp.sqrt(fan_in)
    w = jax.random.uniform(kw_, (fan_in, fan_out), jnp.float32, -bound, bound)
    b = jax.random.uniform(kb_, (fan_out,), jnp.float32, -bound, bound)
    return w, b


def make_params(key, encoded_space_dim, jj, kk, outputs_cnn, outputs_final):
    ks = jax.random.split(key, 7)
    p = {}
    p["enc1_w"], p["enc1_b"] = init_conv(ks[0], 16, 3, 4, 4)
    p["enc2_w"], p["enc2_b"] = init_conv(ks[1], 32, 16, 4, 4)
    p["bn_gamma"] = jnp.ones((32,), jnp.float32)
    p["bn_beta"] = jnp.zeros((32,), jnp.float32)
    p["enc3_w"], p["enc3_b"] = init_conv(ks[2], 64, 32, 4, 4)
    p["lin1_w"], p["lin1_b"] = init_linear(ks[3], 64 * jj * kk, 128)
    p["lin2_w"], p["lin2_b"] = init_linear(ks[4], 128, encoded_space_dim)
    p["cls_w"], p["cls_b"] = init_linear(ks[5], encoded_space_dim, outputs_cnn)
    p["head_w"], p["head_b"] = init_linear(ks[6], outputs_cnn, outputs_final)
    return p


def add_linear_forward(params, x):
    """Forward of add_linear(CNN(...), model_output, OUTPUTS_a). x: NCHW f32."""
    stride = (2, 2)
    x = jnp.transpose(x, (0, 2, 3, 1))              # NCHW -> NHWC once (tiny)
    # CNN backbone, all NHWC
    x = conv2d_pallas_nhwc(x, params["enc1_w"], params["enc1_b"], stride, activation="tanh")
    x = conv2d_pallas_nhwc(x, params["enc2_w"], params["enc2_b"], stride, activation=None)
    x = batchnorm_tanh_pallas_nhwc(x, params["bn_gamma"], params["bn_beta"])
    x = conv2d_pallas_nhwc(x, params["enc3_w"], params["enc3_b"], stride, activation="tanh")
    # Flatten (free contiguous view in NHWC order; the permutation back to
    # PyTorch's (c,h,w) order is folded into the linear weights below).
    N, Ho, Wo, C = x.shape
    y = x.reshape(N, Ho * Wo * C)
    # encoder_lin[0] -> encoder_lin[1] -> CNN.classifier -> add_linear.classifier
    # folded into a single matmul + bias (no nonlinearities in between).
    w_fold, b_fold = fold_linear_head(params, Ho, Wo, C)
    y = matmul_bias_act(y, w_fold, b_fold, activation=None)
    return y


if __name__ == "__main__":
    # Shapes: input 30x30 -> conv(4x4, s=2, p=0) chain gives 14 -> 6 -> 2, so jj=kk=2.
    ENCODED_SPACE_DIM = 32
    JJ, KK = 2, 2
    OUTPUTS_CNN = 10       # CNN's own classifier output == add_linear's model_output
    OUTPUTS_FINAL = 5      # add_linear's OUTPUTS_a

    key = jax.random.PRNGKey(0)
    pkey, xkey = jax.random.split(key)
    params = make_params(pkey, ENCODED_SPACE_DIM, JJ, KK, OUTPUTS_CNN, OUTPUTS_FINAL)

    x = jax.random.normal(xkey, (2, 3, 30, 30), dtype=jnp.float32)

    fwd = jax.jit(add_linear_forward)
    out = fwd(params, x)
    jax.block_until_ready(out)
    assert out.shape == (2, OUTPUTS_FINAL), out.shape
    print("KERNEL_OK")
</pallas_src>

<mosaic_0001>
module attributes {stable_mosaic.version = 11 : i64} {
  func.func @_matmul_bias_act_kernel(%arg0: i32, %arg1: memref<392x48xbf16, #tpu.memory_space<vmem>>, %arg2: memref<48x16xbf16, #tpu.memory_space<vmem>>, %arg3: memref<1x16xf32, #tpu.memory_space<vmem>>, %arg4: memref<392x16xf32, #tpu.memory_space<vmem>>) attributes {dimension_semantics = [#tpu.dimension_semantics<parallel>], iteration_bounds = array<i64: 1>, scalar_prefetch = 0 : i64, scratch_operands = 0 : i64, tpu.core_type = #tpu.core_type<tc>, window_params = [{transform_indices = @transform_0, window_bounds = array<i64: 392, 48>}, {pipeline_mode = #tpu.pipeline_mode<synchronous>, transform_indices = @transform_1, window_bounds = array<i64: 48, 16>}, {pipeline_mode = #tpu.pipeline_mode<synchronous>, transform_indices = @transform_2, window_bounds = array<i64: 1, 16>}, {transform_indices = @transform_3, window_bounds = array<i64: 392, 16>}]} {
    %c0 = arith.constant 0 : index
    %c0_0 = arith.constant 0 : index
    %0 = vector.load %arg1[%c0, %c0_0] : memref<392x48xbf16, #tpu.memory_space<vmem>>, vector<392x48xbf16>
    %c0_1 = arith.constant 0 : index
    %c0_2 = arith.constant 0 : index
    %1 = vector.load %arg2[%c0_1, %c0_2] : memref<48x16xbf16, #tpu.memory_space<vmem>>, vector<48x16xbf16>
    %cst = arith.constant dense<0.000000e+00> : vector<392x16xf32>
    %2 = tpu.matmul %0, %1, %cst {dimension_numbers = #tpu.dot_dimension_numbers<[1], [0], [0], [1], [0, 0, 1, 1], [], []>} : vector<392x48xbf16>, vector<48x16xbf16>, vector<392x16xf32> -> vector<392x16xf32>
    %c0_3 = arith.constant 0 : index
    %c0_4 = arith.constant 0 : index
    %3 = vector.load %arg3[%c0_3, %c0_4] : memref<1x16xf32, #tpu.memory_space<vmem>>, vector<1x16xf32>
    %4 = vector.broadcast %3 : vector<1x16xf32> to vector<392x16xf32>
    %5 = arith.addf %2, %4 : vector<392x16xf32>
    %6 = math.tanh %5 : vector<392x16xf32>
    %c0_5 = arith.constant 0 : index
    %c0_6 = arith.constant 0 : index
    %7 = vector.load %arg4[%c0_5, %c0_6] : memref<392x16xf32, #tpu.memory_space<vmem>>, vector<392x16xf32>
    tpu.vector_store %arg4[%c0_5, %c0_6], %6 {strides = array<i32>} : memref<392x16xf32, #tpu.memory_space<vmem>>, vector<392x16xf32>,
    return
  }
  func.func @transform_0(%arg0: i32) -> (i32, i32) {
    %c0_i32 = arith.constant 0 : i32
    %c0_i32_0 = arith.constant 0 : i32
    return %arg0, %c0_i32 : i32, i32
  }
  func.func @transform_1(%arg0: i32) -> (i32, i32) {
    %c0_i32 = arith.constant 0 : i32
    %c0_i32_0 = arith.constant 0 : i32
    %c0_i32_1 = arith.constant 0 : i32
    return %c0_i32, %c0_i32_0 : i32, i32
  }
  func.func @transform_2(%arg0: i32) -> (i32, i32) {
    %c0_i32 = arith.constant 0 : i32
    %c0_i32_0 = arith.constant 0 : i32
    %c0_i32_1 = arith.constant 0 : i32
    return %c0_i32, %c0_i32_0 : i32, i32
  }
  func.func @transform_3(%arg0: i32) -> (i32, i32) {
    %c0_i32 = arith.constant 0 : i32
    %c0_i32_0 = arith.constant 0 : i32
    return %arg0, %c0_i32 : i32, i32
  }
}

module attributes {stable_mosaic.version = 11 : i64} {
  func.func @_matmul_bias_act_kernel(%arg0: i32, %arg1: memref<72x256xbf16, #tpu.memory_space<vmem>>, %arg2: memref<256x32xbf16, #tpu.memory_space<vmem>>, %arg3: memref<1x32xf32, #tpu.memory_space<vmem>>, %arg4: memref<72x32xf32, #tpu.memory_space<vmem>>) attributes {dimension_semantics = [#tpu.dimension_semantics<parallel>], iteration_bounds = array<i64: 1>, scalar_prefetch = 0 : i64, scratch_operands = 0 : i64, tpu.core_type = #tpu.core_type<tc>, window_params = [{transform_indices = @transform_0, window_bounds = array<i64: 72, 256>}, {pipeline_mode = #tpu.pipeline_mode<synchronous>, transform_indices = @transform_1, window_bounds = array<i64: 256, 32>}, {pipeline_mode = #tpu.pipeline_mode<synchronous>, transform_indices = @transform_2, window_bounds = array<i64: 1, 32>}, {transform_indices = @transform_3, window_bounds = array<i64: 72, 32>}]} {
    %c0 = arith.constant 0 : index
    %c0_0 = arith.constant 0 : index
    %0 = vector.load %arg1[%c0, %c0_0] : memref<72x256xbf16, #tpu.memory_space<vmem>>, vector<72x256xbf16>
    %c0_1 = arith.constant 0 : index
    %c0_2 = arith.constant 0 : index
    %1 = vector.load %arg2[%c0_1, %c0_2] : memref<256x32xbf16, #tpu.memory_space<vmem>>, vector<256x32xbf16>
    %cst = arith.constant dense<0.000000e+00> : vector<72x32xf32>
    %2 = tpu.matmul %0, %1, %cst {dimension_numbers = #tpu.dot_dimension_numbers<[1], [0], [0], [1], [0, 0, 1, 1], [], []>} : vector<72x256xbf16>, vector<256x32xbf16>, vector<72x32xf32> -> vector<72x32xf32>
    %c0_3 = arith.constant 0 : index
    %c0_4 = arith.constant 0 : index
    %3 = vector.load %arg3[%c0_3, %c0_4] : memref<1x32xf32, #tpu.memory_space<vmem>>, vector<1x32xf32>
    %4 = vector.broadcast %3 : vector<1x32xf32> to vector<72x32xf32>
    %5 = arith.addf %2, %4 : vector<72x32xf32>
    %c0_5 = arith.constant 0 : index
    %c0_6 = arith.constant 0 : index
    %6 = vector.load %arg4[%c0_5, %c0_6] : memref<72x32xf32, #tpu.memory_space<vmem>>, vector<72x32xf32>
    tpu.vector_store %arg4[%c0_5, %c0_6], %5 {strides = array<i32>} : memref<72x32xf32, #tpu.memory_space<vmem>>, vector<72x32xf32>,
    return
  }
  func.func @transform_0(%arg0: i32) -> (i32, i32) {
    %c0_i32 = arith.constant 0 : i32
    %c0_i32_0 = arith.constant 0 : i32
    return %arg0, %c0_i32 : i32, i32
  }
  func.func @transform_1(%arg0: i32) -> (i32, i32) {
    %c0_i32 = arith.constant 0 : i32
    %c0_i32_0 = arith.constant 0 : i32
    %c0_i32_1 = arith.constant 0 : i32
    return %c0_i32, %c0_i32_0 : i32, i32
  }
  func.func @transform_2(%arg0: i32) -> (i32, i32) {
    %c0_i32 = arith.constant 0 : i32
    %c0_i32_0 = arith.constant 0 : i32
    %c0_i32_1 = arith.constant 0 : i32
    return %c0_i32, %c0_i32_0 : i32, i32
  }
  func.func @transform_3(%arg0: i32) -> (i32, i32) {
    %c0_i32 = arith.constant 0 : i32
    %c0_i32_0 = arith.constant 0 : i32
    return %arg0, %c0_i32 : i32, i32
  }
}

module attributes {stable_mosaic.version = 11 : i64} {
  func.func @_scale_shift_tanh_kernel(%arg0: i32, %arg1: memref<18x128xf32, #tpu.memory_space<vmem>>, %arg2: memref<1x128xf32, #tpu.memory_space<vmem>>, %arg3: memref<1x128xf32, #tpu.memory_space<vmem>>, %arg4: memref<18x128xf32, #tpu.memory_space<vmem>>) attributes {dimension_semantics = [#tpu.dimension_semantics<parallel>], iteration_bounds = array<i64: 1>, scalar_prefetch = 0 : i64, scratch_operands = 0 : i64, tpu.core_type = #tpu.core_type<tc>, window_params = [{transform_indices = @transform_0, window_bounds = array<i64: 18, 128>}, {pipeline_mode = #tpu.pipeline_mode<synchronous>, transform_indices = @transform_1, window_bounds = array<i64: 1, 128>}, {pipeline_mode = #tpu.pipeline_mode<synchronous>, transform_indices = @transform_2, window_bounds = array<i64: 1, 128>}, {transform_indices = @transform_3, window_bounds = array<i64: 18, 128>}]} {
    %c0 = arith.constant 0 : index
    %c0_0 = arith.constant 0 : index
    %0 = vector.load %arg1[%c0, %c0_0] : memref<18x128xf32, #tpu.memory_space<vmem>>, vector<18x128xf32>
    %c0_1 = arith.constant 0 : index
    %c0_2 = arith.constant 0 : index
    %1 = vector.load %arg2[%c0_1, %c0_2] : memref<1x128xf32, #tpu.memory_space<vmem>>, vector<1x128xf32>
    %2 = vector.broadcast %1 : vector<1x128xf32> to vector<18x128xf32>
    %3 = arith.mulf %0, %2 : vector<18x128xf32>
    %c0_3 = arith.constant 0 : index
    %c0_4 = arith.constant 0 : index
    %4 = vector.load %arg3[%c0_3, %c0_4] : memref<1x128xf32, #tpu.memory_space<vmem>>, vector<1x128xf32>
    %5 = vector.broadcast %4 : vector<1x128xf32> to vector<18x128xf32>
    %6 = arith.addf %3, %5 : vector<18x128xf32>
    %7 = math.tanh %6 : vector<18x128xf32>
    %c0_5 = arith.constant 0 : index
    %c0_6 = arith.constant 0 : index
    %8 = vector.load %arg4[%c0_5, %c0_6] : memref<18x128xf32, #tpu.memory_space<vmem>>, vector<18x128xf32>
    tpu.vector_store %arg4[%c0_5, %c0_6], %7 {strides = array<i32>} : memref<18x128xf32, #tpu.memory_space<vmem>>, vector<18x128xf32>,
    return
  }
  func.func @transform_0(%arg0: i32) -> (i32, i32) {
    %c0_i32 = arith.constant 0 : i32
    %c0_i32_0 = arith.constant 0 : i32
    return %arg0, %c0_i32 : i32, i32
  }
  func.func @transform_1(%arg0: i32) -> (i32, i32) {
    %c0_i32 = arith.constant 0 : i32
    %c0_i32_0 = arith.constant 0 : i32
    %c0_i32_1 = arith.constant 0 : i32
    return %c0_i32, %c0_i32_0 : i32, i32
  }
  func.func @transform_2(%arg0: i32) -> (i32, i32) {
    %c0_i32 = arith.constant 0 : i32
    %c0_i32_0 = arith.constant 0 : i32
    %c0_i32_1 = arith.constant 0 : i32
    return %c0_i32, %c0_i32_0 : i32, i32
  }
  func.func @transform_3(%arg0: i32) -> (i32, i32) {
    %c0_i32 = arith.constant 0 : i32
    %c0_i32_0 = arith.constant 0 : i32
    return %arg0, %c0_i32 : i32, i32
  }
}

module attributes {stable_mosaic.version = 11 : i64} {
  func.func @_matmul_bias_act_kernel(%arg0: i32, %arg1: memref<8x512xbf16, #tpu.memory_space<vmem>>, %arg2: memref<512x64xbf16, #tpu.memory_space<vmem>>, %arg3: memref<1x64xf32, #tpu.memory_space<vmem>>, %arg4: memref<8x64xf32, #tpu.memory_space<vmem>>) attributes {dimension_semantics = [#tpu.dimension_semantics<parallel>], iteration_bounds = array<i64: 1>, scalar_prefetch = 0 : i64, scratch_operands = 0 : i64, tpu.core_type = #tpu.core_type<tc>, window_params = [{transform_indices = @transform_0, window_bounds = array<i64: 8, 512>}, {pipeline_mode = #tpu.pipeline_mode<synchronous>, transform_indices = @transform_1, window_bounds = array<i64: 512, 64>}, {pipeline_mode = #tpu.pipeline_mode<synchronous>, transform_indices = @transform_2, window_bounds = array<i64: 1, 64>}, {transform_indices = @transform_3, window_bounds = array<i64: 8, 64>}]} {
    %c0 = arith.constant 0 : index
    %c0_0 = arith.constant 0 : index
    %0 = vector.load %arg1[%c0, %c0_0] : memref<8x512xbf16, #tpu.memory_space<vmem>>, vector<8x512xbf16>
    %c0_1 = arith.constant 0 : index
    %c0_2 = arith.constant 0 : index
    %1 = vector.load %arg2[%c0_1, %c0_2] : memref<512x64xbf16, #tpu.memory_space<vmem>>, vector<512x64xbf16>
    %cst = arith.constant dense<0.000000e+00> : vector<8x64xf32>
    %2 = tpu.matmul %0, %1, %cst {dimension_numbers = #tpu.dot_dimension_numbers<[1], [0], [0], [1], [0, 0, 1, 1], [], []>} : vector<8x512xbf16>, vector<512x64xbf16>, vector<8x64xf32> -> vector<8x64xf32>
    %c0_3 = arith.constant 0 : index
    %c0_4 = arith.constant 0 : index
    %3 = vector.load %arg3[%c0_3, %c0_4] : memref<1x64xf32, #tpu.memory_space<vmem>>, vector<1x64xf32>
    %4 = vector.broadcast %3 : vector<1x64xf32> to vector<8x64xf32>
    %5 = arith.addf %2, %4 : vector<8x64xf32>
    %6 = math.tanh %5 : vector<8x64xf32>
    %c0_5 = arith.constant 0 : index
    %c0_6 = arith.constant 0 : index
    %7 = vector.load %arg4[%c0_5, %c0_6] : memref<8x64xf32, #tpu.memory_space<vmem>>, vector<8x64xf32>
    tpu.vector_store %arg4[%c0_5, %c0_6], %6 {strides = array<i32>} : memref<8x64xf32, #tpu.memory_space<vmem>>, vector<8x64xf32>,
    return
  }
  func.func @transform_0(%arg0: i32) -> (i32, i32) {
    %c0_i32 = arith.constant 0 : i32
    %c0_i32_0 = arith.constant 0 : i32
    return %arg0, %c0_i32 : i32, i32
  }
  func.func @transform_1(%arg0: i32) -> (i32, i32) {
    %c0_i32 = arith.constant 0 : i32
    %c0_i32_0 = arith.constant 0 : i32
    %c0_i32_1 = arith.constant 0 : i32
    return %c0_i32, %c0_i32_0 : i32, i32
  }
  func.func @transform_2(%arg0: i32) -> (i32, i32) {
    %c0_i32 = arith.constant 0 : i32
    %c0_i32_0 = arith.constant 0 : i32
    %c0_i32_1 = arith.constant 0 : i32
    return %c0_i32, %c0_i32_0 : i32, i32
  }
  func.func @transform_3(%arg0: i32) -> (i32, i32) {
    %c0_i32 = arith.constant 0 : i32
    %c0_i32_0 = arith.constant 0 : i32
    return %arg0, %c0_i32 : i32, i32
  }
}

module attributes {stable_mosaic.version = 11 : i64} {
  func.func @_matmul_bias_act_kernel(%arg0: i32, %arg1: memref<2x256xbf16, #tpu.memory_space<vmem>>, %arg2: memref<256x5xbf16, #tpu.memory_space<vmem>>, %arg3: memref<1x5xf32, #tpu.memory_space<vmem>>, %arg4: memref<2x5xf32, #tpu.memory_space<vmem>>) attributes {dimension_semantics = [#tpu.dimension_semantics<parallel>], iteration_bounds = array<i64: 1>, scalar_prefetch = 0 : i64, scratch_operands = 0 : i64, tpu.core_type = #tpu.core_type<tc>, window_params = [{transform_indices = @transform_0, window_bounds = array<i64: 2, 256>}, {pipeline_mode = #tpu.pipeline_mode<synchronous>, transform_indices = @transform_1, window_bounds = array<i64: 256, 5>}, {pipeline_mode = #tpu.pipeline_mode<synchronous>, transform_indices = @transform_2, window_bounds = array<i64: 1, 5>}, {transform_indices = @transform_3, window_bounds = array<i64: 2, 5>}]} {
    %c0 = arith.constant 0 : index
    %c0_0 = arith.constant 0 : index
    %0 = vector.load %arg1[%c0, %c0_0] : memref<2x256xbf16, #tpu.memory_space<vmem>>, vector<2x256xbf16>
    %c0_1 = arith.constant 0 : index
    %c0_2 = arith.constant 0 : index
    %1 = vector.load %arg2[%c0_1, %c0_2] : memref<256x5xbf16, #tpu.memory_space<vmem>>, vector<256x5xbf16>
    %cst = arith.constant dense<0.000000e+00> : vector<2x5xf32>
    %2 = tpu.matmul %0, %1, %cst {dimension_numbers = #tpu.dot_dimension_numbers<[1], [0], [0], [1], [0, 0, 1, 1], [], []>} : vector<2x256xbf16>, vector<256x5xbf16>, vector<2x5xf32> -> vector<2x5xf32>
    %c0_3 = arith.constant 0 : index
    %c0_4 = arith.constant 0 : index
    %3 = vector.load %arg3[%c0_3, %c0_4] : memref<1x5xf32, #tpu.memory_space<vmem>>, vector<1x5xf32>
    %4 = vector.broadcast %3 : vector<1x5xf32> to vector<2x5xf32>
    %5 = arith.addf %2, %4 : vector<2x5xf32>
    %c0_5 = arith.constant 0 : index
    %c0_6 = arith.constant 0 : index
    %6 = vector.load %arg4[%c0_5, %c0_6] : memref<2x5xf32, #tpu.memory_space<vmem>>, vector<2x5xf32>
    tpu.vector_store %arg4[%c0_5, %c0_6], %5 {strides = array<i32>} : memref<2x5xf32, #tpu.memory_space<vmem>>, vector<2x5xf32>,
    return
  }
  func.func @transform_0(%arg0: i32) -> (i32, i32) {
    %c0_i32 = arith.constant 0 : i32
    %c0_i32_0 = arith.constant 0 : i32
    return %arg0, %c0_i32 : i32, i32
  }
  func.func @transform_1(%arg0: i32) -> (i32, i32) {
    %c0_i32 = arith.constant 0 : i32
    %c0_i32_0 = arith.constant 0 : i32
    %c0_i32_1 = arith.constant 0 : i32
    return %c0_i32, %c0_i32_0 : i32, i32
  }
  func.func @transform_2(%arg0: i32) -> (i32, i32) {
    %c0_i32 = arith.constant 0 : i32
    %c0_i32_0 = arith.constant 0 : i32
    %c0_i32_1 = arith.constant 0 : i32
    return %c0_i32, %c0_i32_0 : i32, i32
  }
  func.func @transform_3(%arg0: i32) -> (i32, i32) {
    %c0_i32 = arith.constant 0 : i32
    %c0_i32_0 = arith.constant 0 : i32
    return %arg0, %c0_i32 : i32, i32
  }
}

</mosaic_0001>

<llo_original>
// kernel: tile.13
$region0: #{tile.13}
  #allocation0 [shape = 's32[1]{0}', space=sflag, size = 0x4, scoped, tag = 'scoped memory for tile.13']
  %s0 = inlined_call_operand.vmem [shape: f32[32], index: 0, kind: input, shape index: {}]
  %s1 = inlined_call_operand.vmem [shape: f32[4,32], index: 1, kind: output, shape index: {}]
  // Predicated region
  $region2: #{tile.13} parent=0 // pred_check
    _
  $region3: #{tile.13} parent=0 // pred_check_branch
    %3 = sbr.rel (0) target = $region5
  $region4: #{tile.13} parent=0 // pred_region
    _
  $region5: #{tile.13} parent=0 // pred_fallthru
    _
  %v4 = vld [vmem:[%s0] ss:$0 sm:$0xff]
  %5 = vst [vmem:[%s1] sm:$0xf] %v4

// kernel: tile.14
$region0: #{tile.14}
  %s0 = inlined_call_operand.vmem [shape: f32[4,32], index: 0, kind: input, shape index: {}]
  %s1 = inlined_call_operand.vmem [shape: f32[1,128], index: 1, kind: output, shape index: {}]
  $region1: #{tile.14} parent=0
    #allocation0 [shape = 'u8[4096]{0}', space=vmem, size = 0x1000, scoped, tag = 'scoped mem for output reshape']
    #allocation1 [shape = 'u8[4096]{0}', space=vmem, size = 0x1000, scoped, tag = 'scoped mem for input reshape']
    %s3 = sshllo.u32 0, 4
    %v4 = vld [vmem:[%s0] sm:%s3]
    %5 = vst [vmem:[#allocation1] sm:%s3] %v4
    %v6 = vld [vmem:[#allocation1] sm:$0x1]
    %vm7 = vcmask 261120
    %8 = vst.msk [vmem:[#allocation0] sm:$0x1] %vm7, %v6
    %s9 = scalar_lea.vmem [#allocation1], 3
    %v10 = vld [vmem:[%s9] sm:$0x1]
    %11 = vrot.lane.b32.xlu0 %v10, 96
    %v12 = vpop.permute.xlu0 %11
    %vm13 = vcmask 1048320
    %14 = vst.msk [vmem:[#allocation0] sm:$0x1] %vm13, %v12
    %s15 = scalar_lea.vmem [#allocation1], 2
    %v16 = vld [vmem:[%s15] sm:$0x1]
    %17 = vrot.lane.b32.xlu0 %v16, 64
    %v18 = vpop.permute.xlu0 %17
    %vm19 = vcmask 785920
    %20 = vst.msk [vmem:[#allocation0] sm:$0x1] %vm19, %v18
    %s21 = scalar_lea.vmem [#allocation1], 1
    %v22 = vld [vmem:[%s21] sm:$0x1]
    %23 = vrot.lane.b32.xlu0 %v22, 32
    %v24 = vpop.permute.xlu0 %23
    %vm25 = vcmask 523520
    %26 = vst.msk [vmem:[#allocation0] sm:$0x1] %vm25, %v24
    %s28 = sshllo.u32 0, 1
    %v30 = vld [vmem:[#allocation0] sm:%s28]
    %s31 = sshllo.u32 0, 1
    %32 = vst [vmem:[%s1] sm:%s31] %v30

</llo_original>
